<compile_context>
chip_gen: v7x
topology: tpu7x:2x2x1
jax: 0.10.0
libtpu: 0.0.40
codegen_flags: <defaults>
</compile_context>

<pallas_src>
import math
from functools import partial

import numpy as np
import jax
import jax.numpy as jnp
from jax.experimental import pallas as pl
from jax.experimental.pallas import tpu as pltpu


def _pos_emb_kernel(tab_ref, x_ref, out_ref, *, dim, pack):
    # tab_ref: (2, lane_w)  row 0 = per-lane frequency, row 1 = per-lane phase
    #          (phase = 0 on sin lanes, pi/2 on cos lanes; cos(x) = sin(x+pi/2))
    # x_ref:   (tn, pack)   float32 positions (pack positions per row)
    # out_ref: (tn, lane_w) lane-dense [sin | cos] per position, lane_w = pack*dim
    freq = tab_ref[0:1, :]                     # (1, lane_w)
    phase = tab_ref[1:2, :]                    # (1, lane_w)
    x = x_ref[...]                             # (tn, pack)
    tn = x.shape[0]
    if pack == 1:
        x_full = x                             # (tn, 1) broadcasts against (1, lane_w)
    else:
        # Expand each packed position to its dim consecutive lanes (static unroll,
        # pack <= 32); cheap VPU/XLU work that feeds ONE full-width sin below.
        x_full = jnp.concatenate(
            [jnp.broadcast_to(x[:, p:p + 1], (tn, dim)) for p in range(pack)],
            axis=-1)                           # (tn, lane_w)
    # One transcendental per output element, one unmasked full-width store.
    out_ref[...] = jnp.sin(x_full * freq + phase).astype(out_ref.dtype)


def _make_lane_table(dim, half_dim, lane_w, scale):
    # Per-lane frequency and phase, built with numpy at trace time (constants).
    k = np.arange(lane_w) % dim
    is_cos = k >= half_dim
    kk = np.where(is_cos, k - half_dim, k).astype(np.float32)
    freq = np.exp(kk * np.float32(-scale)).astype(np.float32)
    phase = np.where(is_cos, np.float32(math.pi / 2.0),
                     np.float32(0.0)).astype(np.float32)
    return jnp.asarray(np.stack([freq, phase], axis=0))     # (2, lane_w)


def _pos_emb_pallas(x_flat, dim, block_rows, out_dtype):
    n = x_flat.shape[0]
    half_dim = dim // 2
    scale = math.log(10000.0) / (half_dim - 1)

    # Lane packing: pack positions per row so the last dim is a full 128 lanes.
    if dim <= 128 and 128 % dim == 0:
        pack = 128 // dim
    else:
        # dim % 128 == 0 stays lane-dense (pack=1, lane_w=dim); other dims fall
        # back to a correct but lane-padded pack=1 path.
        pack = 1
    lane_w = pack * dim

    table = _make_lane_table(dim, half_dim, lane_w, scale)

    # Row tiling (sublane-aligned).
    rows = -(-n // pack)                               # ceil(n / pack)
    rows8 = ((rows + 7) // 8) * 8
    block_rows = max(8, min(int(block_rows), 8192))
    block_rows = (block_rows // 8) * 8
    # Keep >= ~4 grid steps when there is enough work (v7x shards the
    # 'parallel' axis across its 2 TensorCores).
    quarter = (((rows8 + 3) // 4) + 7) // 8 * 8
    tn = min(block_rows, rows8, max(8, quarter))
    rows_padded = ((rows8 + tn - 1) // tn) * tn
    n_padded = rows_padded * pack

    if n_padded != n:
        x_flat = jnp.concatenate(
            [x_flat, jnp.zeros((n_padded - n,), jnp.float32)])
    x_packed = x_flat.reshape(rows_padded, pack)

    out_packed = pl.pallas_call(
        partial(_pos_emb_kernel, dim=dim, pack=pack),
        out_shape=jax.ShapeDtypeStruct((rows_padded, lane_w), out_dtype),
        grid_spec=pltpu.PrefetchScalarGridSpec(
            num_scalar_prefetch=0,
            grid=(rows_padded // tn,),
            in_specs=[pl.BlockSpec((2, lane_w), lambda i: (0, 0)),   # freq/phase
                      pl.BlockSpec((tn, pack), lambda i: (i, 0))],   # positions
            out_specs=pl.BlockSpec((tn, lane_w), lambda i: (i, 0)),
        ),
        compiler_params=pltpu.CompilerParams(
            dimension_semantics=("parallel",),
            # (tn,pack) input block pads lanes to 128 in VMEM -> costs as much
            # as the output block; 32 MiB covers block_rows up to 8192 on all
            # of v5e/v6e/v7x (physical 128/128/64 MiB).
            vmem_limit_bytes=32 * 1024 * 1024),
    )(table, x_packed)

    # Contiguous (free) reshape back to one row per position.
    out = out_packed.reshape(rows_padded * pack, dim)
    if n_padded != n:                          # only slice when padding was added
        out = out[:n]
    return out


def _pos_emb_jax(x_flat, dim, out_dtype):
    # Fused pure-JAX path for tiny inputs (pallas_call overhead not worth it).
    half_dim = dim // 2
    scale = math.log(10000.0) / (half_dim - 1)
    freqs = jnp.exp(jnp.arange(half_dim, dtype=jnp.float32) * -scale)
    emb = x_flat[:, None] * freqs[None, :]
    return jnp.concatenate([jnp.sin(emb), jnp.cos(emb)], axis=-1).astype(out_dtype)


def sinusoidal_pos_emb(x, dim, *, block_rows=2048, min_pallas_elems=512,
                       out_dtype=jnp.float32):
    """SinusoidalPosEmb.forward.  x: (N,) or (B, S). Returns (N, dim) or (B, S*dim)."""
    if dim < 4 or dim % 2 != 0:
        raise ValueError(
            "dim must be an even integer >= 4 (module divides by half_dim - 1).")
    orig_shape = x.shape
    x_flat = x.reshape(-1).astype(jnp.float32)
    n = x_flat.shape[0]

    if n < min_pallas_elems:
        out = _pos_emb_jax(x_flat, dim, out_dtype)     # tiny: let XLA fuse it
    else:
        out = _pos_emb_pallas(x_flat, dim, block_rows, out_dtype)

    if len(orig_shape) == 2:                  # PyTorch: (B, S, dim) -> view(B, S*dim)
        b, s = orig_shape
        return out.reshape(b, s * dim)
    return out.reshape(*orig_shape, dim)


def _reference(x, dim):
    # Pure-JAX reference mirroring the PyTorch forward exactly.
    half_dim = dim // 2
    emb = math.log(10000.0) / (half_dim - 1)
    emb = jnp.exp(jnp.arange(half_dim, dtype=jnp.float32) * -emb)
    emb = x[..., None].astype(jnp.float32) * emb
    emb = jnp.concatenate([jnp.sin(emb), jnp.cos(emb)], axis=-1)
    if emb.ndim == 3:
        emb = emb.reshape(emb.shape[0], emb.shape[1] * emb.shape[2])
    return emb


if __name__ == "__main__":
    key = jax.random.PRNGKey(0)
    dim = 32
    k1, k2, k3, k4 = jax.random.split(key, 4)

    # Case 1: tiny 1-D timestep vector -> pure-JAX fast path (default dispatch).
    t = jax.random.uniform(k1, (8,), dtype=jnp.float32) * 1000.0
    out1 = jax.block_until_ready(sinusoidal_pos_emb(t, dim))
    assert out1.shape == (8, dim)
    assert jnp.allclose(out1, _reference(t, dim), atol=1e-5, rtol=1e-5)

    # Case 2: same tiny input but forcing the Pallas kernel (single tile).
    # Looser atol: TPU sin/cos approximation + cos(x)=sin(x+pi/2) for args up to ~1000.
    out2 = jax.block_until_ready(sinusoidal_pos_emb(t, dim, min_pallas_elems=1))
    assert out2.shape == (8, dim)
    assert jnp.allclose(out2, _reference(t, dim), atol=5e-4, rtol=1e-5)

    # Case 3: 2-D (B, S) input -> flattened (B, S*dim) output, Pallas path.
    x2 = jax.random.uniform(k2, (2, 8), dtype=jnp.float32) * 100.0
    out3 = jax.block_until_ready(sinusoidal_pos_emb(x2, dim, min_pallas_elems=1))
    assert out3.shape == (2, 8 * dim)
    assert jnp.allclose(out3, _reference(x2, dim), atol=2e-4, rtol=1e-5)

    # Case 4: S not a multiple of the packing factor + small block_rows so the
    # kernel runs a multi-step pipelined grid and exercises row padding.
    x3 = jax.random.uniform(k3, (4, 63), dtype=jnp.float32) * 100.0
    out4 = jax.block_until_ready(
        sinusoidal_pos_emb(x3, dim, min_pallas_elems=1, block_rows=8))
    assert out4.shape == (4, 63 * dim)
    assert jnp.allclose(out4, _reference(x3, dim), atol=2e-4, rtol=1e-5)

    # Case 5: larger 1-D input, default dispatch -> Pallas path with the new
    # tile sizing (>= 4 grid steps, no padding, no un-pad slice).
    x4 = jax.random.uniform(k4, (4096,), dtype=jnp.float32) * 100.0
    out5 = jax.block_until_ready(sinusoidal_pos_emb(x4, dim))
    assert out5.shape == (4096, dim)
    assert jnp.allclose(out5, _reference(x4, dim), atol=2e-4, rtol=1e-5)

    # Case 6: optional bf16 output (halves HBM writeback when the consumer allows).
    out6 = jax.block_until_ready(
        sinusoidal_pos_emb(x4, dim, out_dtype=jnp.bfloat16))
    assert out6.dtype == jnp.bfloat16 and out6.shape == (4096, dim)
    assert jnp.allclose(out6.astype(jnp.float32), _reference(x4, dim),
                        atol=1.5e-2, rtol=1e-2)

    print("KERNEL_OK")
</pallas_src>

<mosaic_0001>
module attributes {stable_mosaic.version = 11 : i64} {
  func.func @_pos_emb_kernel(%arg0: i32, %arg1: memref<2x128xf32, #tpu.memory_space<vmem>>, %arg2: memref<8x4xf32, #tpu.memory_space<vmem>>, %arg3: memref<8x128xf32, #tpu.memory_space<vmem>>) attributes {dimension_semantics = [#tpu.dimension_semantics<parallel>], iteration_bounds = array<i64: 1>, scalar_prefetch = 0 : i64, scratch_operands = 0 : i64, tpu.core_type = #tpu.core_type<tc>, window_params = [{pipeline_mode = #tpu.pipeline_mode<synchronous>, transform_indices = @transform_0, window_bounds = array<i64: 2, 128>}, {transform_indices = @transform_1, window_bounds = array<i64: 8, 4>}, {transform_indices = @transform_2, window_bounds = array<i64: 8, 128>}]} {
    %c0 = arith.constant 0 : index
    %c0_0 = arith.constant 0 : index
    %0 = vector.load %arg1[%c0, %c0_0] : memref<2x128xf32, #tpu.memory_space<vmem>>, vector<1x128xf32>
    %c1 = arith.constant 1 : index
    %c0_1 = arith.constant 0 : index
    %1 = vector.load %arg1[%c1, %c0_1] : memref<2x128xf32, #tpu.memory_space<vmem>>, vector<1x128xf32>
    %c0_2 = arith.constant 0 : index
    %c0_3 = arith.constant 0 : index
    %2 = vector.load %arg2[%c0_2, %c0_3] : memref<8x4xf32, #tpu.memory_space<vmem>>, vector<8x4xf32>
    %3 = vector.extract_strided_slice %2 {offsets = [0, 0], sizes = [8, 1], strides = [1, 1]} : vector<8x4xf32> to vector<8x1xf32>
    %4 = vector.shape_cast %3 : vector<8x1xf32> to vector<8x1xf32>
    %5 = vector.broadcast %4 : vector<8x1xf32> to vector<8x32xf32>
    %6 = vector.extract_strided_slice %2 {offsets = [0, 1], sizes = [8, 1], strides = [1, 1]} : vector<8x4xf32> to vector<8x1xf32>
    %7 = vector.shape_cast %6 : vector<8x1xf32> to vector<8x1xf32>
    %8 = vector.broadcast %7 : vector<8x1xf32> to vector<8x32xf32>
    %9 = vector.extract_strided_slice %2 {offsets = [0, 2], sizes = [8, 1], strides = [1, 1]} : vector<8x4xf32> to vector<8x1xf32>
    %10 = vector.shape_cast %9 : vector<8x1xf32> to vector<8x1xf32>
    %11 = vector.broadcast %10 : vector<8x1xf32> to vector<8x32xf32>
    %12 = vector.extract_strided_slice %2 {offsets = [0, 3], sizes = [8, 1], strides = [1, 1]} : vector<8x4xf32> to vector<8x1xf32>
    %13 = vector.shape_cast %12 : vector<8x1xf32> to vector<8x1xf32>
    %14 = vector.broadcast %13 : vector<8x1xf32> to vector<8x32xf32>
    %15 = tpu.concatenate %5, %8, %11, %14 in 1 : vector<8x32xf32>, vector<8x32xf32>, vector<8x32xf32>, vector<8x32xf32> -> vector<8x128xf32>
    %16 = vector.broadcast %0 : vector<1x128xf32> to vector<8x128xf32>
    %17 = arith.mulf %15, %16 : vector<8x128xf32>
    %18 = vector.broadcast %1 : vector<1x128xf32> to vector<8x128xf32>
    %19 = arith.addf %17, %18 : vector<8x128xf32>
    %20 = math.sin %19 : vector<8x128xf32>
    %c0_4 = arith.constant 0 : index
    %c0_5 = arith.constant 0 : index
    %21 = vector.load %arg3[%c0_4, %c0_5] : memref<8x128xf32, #tpu.memory_space<vmem>>, vector<8x128xf32>
    tpu.vector_store %arg3[%c0_4, %c0_5], %20 {strides = array<i32>} : memref<8x128xf32, #tpu.memory_space<vmem>>, vector<8x128xf32>,
    return
  }
  func.func @transform_0(%arg0: i32) -> (i32, i32) {
    %c0_i32 = arith.constant 0 : i32
    %c0_i32_0 = arith.constant 0 : i32
    %c0_i32_1 = arith.constant 0 : i32
    return %c0_i32, %c0_i32_0 : i32, i32
  }
  func.func @transform_1(%arg0: i32) -> (i32, i32) {
    %c0_i32 = arith.constant 0 : i32
    %c0_i32_0 = arith.constant 0 : i32
    return %arg0, %c0_i32 : i32, i32
  }
  func.func @transform_2(%arg0: i32) -> (i32, i32) {
    %c0_i32 = arith.constant 0 : i32
    %c0_i32_0 = arith.constant 0 : i32
    return %arg0, %c0_i32 : i32, i32
  }
}

</mosaic_0001>

<llo_original>
// kernel: tpu_custom_call.1
$region0: #{tpu_custom_call.1}
  #allocation0 [shape = 'u32[]', space=smem, size = 0x4, offset = 0x4, fixed_abs, tag = 'smem constant byte address 0x4 - core index']
  #allocation1 [shape = 'u32[144,128]{1,0:T(1,128)}', space=vmem, size = 0x12000, scoped, tag = 'internal scratch']
  %s0 = inlined_call_operand.vmem [shape: f32[2,128], index: 0, kind: input, shape index: {}]
  %s1 = inlined_call_operand.vmem [shape: f32[8,4], index: 1, kind: input, shape index: {}]
  %s2 = inlined_call_operand.hbm [shape: f32[8,128], index: 2, kind: output, shape index: {}]
  %s3 = sld [smem:[#allocation0]]
  $region18: #{tpu_custom_call.1} parent=0
    _
  %s5 = ssub.s32 1, %s3
  %s6 = scalar_select 0, %s5, %s3
  $region1: #{tpu_custom_call.1} parent=0
    #allocation2 [shape = 'u8[4096]{0}', space=vmem, size = 0x1000, scoped, tag = 'output window, operand 0, single buffered']
    #allocation3 [shape = 's32[1]{0}', space=sflag, size = 0x4, scoped, tag = 'scoped memory for tpu_custom_call.1']
    %7 = vsyncpa [#allocation3], 0
    // Predicated region
    $region2: #{tpu_custom_call.1} parent=1 // pred_check
      _
    $region3: #{tpu_custom_call.1} parent=1 // pred_check_branch
      %9 = sbr.rel (0) target = $region5
    $region4: #{tpu_custom_call.1} parent=1 // pred_region
      _
    $region5: #{tpu_custom_call.1} parent=1 // pred_fallthru
      _
    // Predicated region
    $region6: #{tpu_custom_call.1} parent=1 // pred_check
      _
    $region7: #{tpu_custom_call.1} parent=1 // pred_check_branch
      %11 = sbr.rel (0) target = $region9
    $region8: #{tpu_custom_call.1} parent=1 // pred_region
      _
    $region9: #{tpu_custom_call.1} parent=1 // pred_fallthru
      _
    %v12 = vld [vmem:[%s0] sm:$0x1]
    %v13 = vld [vmem:[%s0 + $0x1] sm:$0x1]
    %v14 = vld [vmem:[%s1] sm:$0xff]
    %16 = vset.pattern.permute.xlu0 0
    %17 = vperm.xlu0 %16, %v14
    %v18 = vpop.permute.xlu0 %17
    %20 = vset.pattern.permute.xlu0 1
    %21 = vperm.xlu0 %20, %v14
    %v22 = vpop.permute.xlu0 %21
    %24 = vset.pattern.permute.xlu0 2
    %25 = vperm.xlu0 %24, %v14
    %v26 = vpop.permute.xlu0 %25
    %28 = vset.pattern.permute.xlu0 3
    %29 = vperm.xlu0 %28, %v14
    %v30 = vpop.permute.xlu0 %29
    %vm32 = vcmask 261120
    %v33 = vsel %vm32, %v18, %v22
    %vm34 = vcmask 523264
    %v35 = vsel %vm34, %v33, %v26
    %vm36 = vcmask 785408
    %v37 = vsel %vm36, %v35, %v30
    %v38 = vlaneseq
    %v39 = vshrl.u32 %v38, 7
    %v40 = vsub.s32 0, %v39
    %v41 = vrot.slane %v12, %v40
    %v42 = vmul.f32 %v37, %v41
    %v43 = vlaneseq
    %v44 = vshrl.u32 %v43, 7
    %v45 = vsub.s32 0, %v44
    %v46 = vrot.slane %v13, %v45
    %v47 = vadd.f32 %v42, %v46
    %v48 = vand.u32 2147483647, %v47
    %vm49 = vcmp.le.f32.partialorder %v48, 0.7853982
    %vm50 = vcmp.lt.s32.totalorder %v47, 0
    %v51 = vand.u32 %v47, 2139095040
    %v52 = vshrl.u32 %v51, 23
    %v53 = vsub.s32 %v52, 127
    %v54 = vand.u32 2147483647, %v47
    %v55 = vand.u32 %v54, 8388607
    %v56 = vor.u32 %v55, 8388608
    %v57 = vsub.s32 0, %v56
    %v58 = vadd.s32 %v53, 1
    %vm59 = vcmp.gt.s32.totalorder %v58, 0
    %v60 = vsel %vm59, %v58, 0
    %v61 = vshrl.u32 %v60, 5
    %v62 = vand.u32 %v60, 31
    %v63 = vsub.s32 32, %v62
    %v64 = vshrl.u32 683565275, %v63
    %v65 = vshll.u32 683565275, %v62
    %v66 = vshrl.u32 2475754826, %v63
    %v67 = vor.u32 %v65, %v66
    %v68 = vshll.u32 2475754826, %v62
    %v69 = vshrl.u32 2131351028, %v63
    %v70 = vor.u32 %v68, %v69
    %v71 = vshll.u32 2131351028, %v62
    %v72 = vshrl.u32 2102212464, %v63
    %v73 = vor.u32 %v71, %v72
    %v74 = vshll.u32 2102212464, %v62
    %v75 = vshrl.u32 920167782, %v63
    %v76 = vor.u32 %v74, %v75
    %v77 = vshll.u32 920167782, %v62
    %v78 = vshrl.u32 1326507024, %v63
    %v79 = vor.u32 %v77, %v78
    %vm80 = vcmp.lt.s32.totalorder %v61, 1
    %vm81 = vcmp.lt.s32.totalorder %v61, 2
    %vm82 = vcmp.lt.s32.totalorder %v61, 3
    %vm83 = vcmp.lt.s32.totalorder %v61, 4
    %v84 = vsel %vm80, %v64, %v67
    %v85 = vsel %vm83, %v73, 2102212464
    %v86 = vsel %vm82, %v70, %v85
    %v87 = vsel %vm81, %v84, %v86
    %v88 = vsel %vm80, %v67, %v70
    %v89 = vsel %vm83, %v76, 920167782
    %v90 = vsel %vm82, %v73, %v89
    %v91 = vsel %vm81, %v88, %v90
    %v92 = vsel %vm80, %v70, %v73
    %v93 = vsel %vm83, %v79, 1326507024
    %v94 = vsel %vm82, %v76, %v93
    %v95 = vsel %vm81, %v92, %v94
    %v96 = vshll.u32 %v56, 8
    %v97 = vmul.u32.u64.compose %v96, %v95
    %v98 = vextract.low.u32 %v97
    %v99 = vextract.high.u32 %v97
    %v100 = vmul.u32.u64.compose %v96, %v91
    %v101 = vextract.low.u32 %v100
    %v102 = vextract.high.u32 %v100
    %v103 = vmul.u32 %v96, %v87
    %v104 = vadd.s32 %v99, %v101
    %vm105 = vc.u32 %v99, %v101
    %v106 = vadd.s32 %v102, 1
    %v107 = vsel %vm105, %v106, %v102
    %v108 = vadd.s32 %v103, %v107
    %v109 = vadd.s32 %v108, 536870912
    %v110 = vshrl.u32 %v109, 30
    %v111 = vshll.u32 %v110, 30
    %v112 = vsub.s32 %v108, %v111
    %vm113 = vcmp.lt.s32.totalorder %v112, 0
    %v114 = vsub.s32 0, %v112
    %v115 = vsel %vm113, %v114, %v112
    %v116 = vclz %v115
    %v117 = vsub.s32 %v116, 2
    %vm118 = vcmp.gt.s32.totalorder 0, %v117
    %v119 = vsel %vm118, 0, %v117
    %v120 = vsub.s32 32, %v119
    %v121 = vshll.u32 %v112, %v119
    %v122 = vshrl.u32 %v104, %v120
    %v123 = vor.u32 %v121, %v122
    %v124 = vsub.s32 4294967266, %v119
    %v125 = vadd.s32 %v124, 127
    %v126 = vshll.u32 %v125, 23
    %v127 = vor.u32 4788187, %v126
    %v128 = vand.u32 2147483647, %v127
    %v130 = vcvt.s32.f32 %v123
    %v131 = vmul.f32 %v130, %v128
    %v132 = vxor.u32 %v131, 2147483648
    %v133 = vsel %vm50, %v132, %v131
    %v134 = vsub.s32 4, %v110
    %v135 = vsel %vm50, %v134, %v110
    %v136 = vsel %vm49, %v47, %v133
    %v137 = vsel %vm49, 0, %v135
    %v138 = vcosq.f32.pop %v136
    %v139 = vsinq.f32.pop %v136
    %vm140 = vweird.f32 %v47
    %v141 = vadd.s32 %v137, 3
    %v142 = vand.u32 %v141, 3
    %vm143 = vcmp.lt.s32.totalorder %v142, 2
    %vm144 = vcmp.eq.s32.totalorder %v142, 0
    %v145 = vxor.u32 %v139, 2147483648
    %v146 = vsel %vm144, %v138, %v145
    %vm147 = vcmp.eq.s32.totalorder %v142, 2
    %v148 = vxor.u32 %v138, 2147483648
    %v149 = vsel %vm147, %v148, %v139
    %v150 = vsel %vm143, %v146, %v149
    %v151 = vsel %vm140, nan, %v150
    %152 = vst [vmem:[#allocation2] sm:$0xff] %v151
    // Predicated region
    $region10: #{tpu_custom_call.1} parent=1 // pred_check
      _
    $region11: #{tpu_custom_call.1} parent=1 // pred_check_branch
      %154 = sbr.rel (0) target = $region13
    $region12: #{tpu_custom_call.1} parent=1 // pred_region
      %s156 = ssub.s32 128, 128
      %157 = vsyncadd [#allocation3], %s156
      %s159 = sshll.u32 [#allocation2], 4
      %s160 = int_to_ptr.vmem [resolvable:$true] %s159
      %162 = dma.vmem_to_hbm [thread:$0]  %s160, 128, %s2, [#allocation3]
    $region13: #{tpu_custom_call.1} parent=1 // pred_fallthru
      _
    // Predicated region
    $region14: #{tpu_custom_call.1} parent=1 // pred_check
      _
    $region15: #{tpu_custom_call.1} parent=1 // pred_check_branch
      %164 = sbr.rel (0) target = $region17
    $region16: #{tpu_custom_call.1} parent=1 // pred_region
      %165 = dma.done [#allocation3], 128
    $region17: #{tpu_custom_call.1} parent=1 // pred_fallthru
      _
    %166 = vsyncpa [#allocation3], 1

</llo_original>
